<compile_context>
chip_gen: v5e
topology: v5e:2x2
jax: 0.10.0
libtpu: 0.0.40
codegen_flags: <defaults>
</compile_context>

<pallas_src>
import functools

import jax
import jax.numpy as jnp
from jax.experimental import pallas as pl
from jax.experimental.pallas import tpu as pltpu

_LANES = 128


def _pck_kernel(diff_ref, out_ref, *, thr2):
    # diff_ref: (3, T, 128) masked (gt - pr); out_ref: (T, 128) f32
    d0 = diff_ref[0].astype(jnp.float32)
    d1 = diff_ref[1].astype(jnp.float32)
    d2 = diff_ref[2].astype(jnp.float32)
    sq = d0 * d0 + d1 * d1 + d2 * d2            # squared L2 over coords (pure VPU)
    out_ref[...] = (sq < thr2).astype(out_ref.dtype)


def _round_up8(x):
    return ((x + 7) // 8) * 8


def pck_pallas(y_pr, points_gt, gt_mask=None, threshold=0.15,
               rows_tile_max=2048, min_points_for_pallas=65536):
    """y_pr, points_gt: (B, N, 3); gt_mask: optional (B, N) bool. Returns (B, N) f32 of 0/1."""
    B, N, C = y_pr.shape
    assert C == 3
    # sq < thr^2 is only equivalent to dist < thr for positive thresholds.
    assert threshold > 0, "PCK threshold must be positive"
    thr2 = float(threshold) * float(threshold)

    # --- wrapper-side fusion: mask + subtraction in the original layout ------
    gt = points_gt.astype(jnp.float32)
    if gt_mask is not None:
        gt = jnp.where(gt_mask[..., None], gt, 0.0)     # points_gt[~gt_mask] = 0
    diff = gt - y_pr.astype(jnp.float32)                # (B, N, 3)

    M = B * N

    # --- small-size fallback: a single XLA fusion beats launch + relayout ----
    if M < min_points_for_pallas:
        sq = jnp.sum(diff * diff, axis=-1)
        return (sq < thr2).astype(jnp.float32)

    # --- lane-dense relayout: (B*N, 3) -> (3, rows8, 128) --------------------
    rows = pl.cdiv(M, _LANES)                 # ceil(M / 128)
    rows8 = _round_up8(rows)                  # sublane-aligned row count
    # Cap the tile so the (parallel) grid has >= 2 steps when possible: on v7x
    # both TensorCores must stream to saturate HBM for this mem-bound kernel.
    rows_tile = max(8, min(rows_tile_max, _round_up8(pl.cdiv(rows8, 2))))
    grid = (pl.cdiv(rows8, rows_tile),)       # ragged last block is OK

    M8 = rows8 * _LANES
    diff_flat = diff.reshape(M, 3)
    if M8 != M:
        diff_flat = jnp.pad(diff_flat, ((0, M8 - M), (0, 0)))
    diff_t = diff_flat.T.reshape(3, rows8, _LANES)      # single relayouted array

    kernel = functools.partial(_pck_kernel, thr2=thr2)

    # Per-step VMEM: in 3*rows_tile*128*4 + out rows_tile*128*4 (<= 4 MiB),
    # ~8 MiB double-buffered: under the scoped-VMEM default on v5e/v6e/v7x,
    # so no vmem_limit_bytes override is needed at rows_tile <= 2048.
    out = pl.pallas_call(
        kernel,
        out_shape=jax.ShapeDtypeStruct((rows8, _LANES), jnp.float32),
        grid=grid,
        in_specs=[
            pl.BlockSpec((3, rows_tile, _LANES), lambda i: (0, i, 0)),
        ],
        out_specs=pl.BlockSpec((rows_tile, _LANES), lambda i: (i, 0)),
        compiler_params=pltpu.CompilerParams(
            dimension_semantics=("parallel",),
        ),
    )(diff_t)

    # Crop padded tail (padded region holds meaningless 0/1 values) and reshape back.
    # Keep this crop immediately adjacent to the kernel call.
    return out.reshape(M8)[:M].reshape(B, N)


def _pck_reference(y_pr, points_gt, gt_mask=None, threshold=0.15):
    gt = points_gt
    if gt_mask is not None:
        gt = jnp.where(gt_mask[..., None], gt, 0.0)
    dist = jnp.linalg.norm(gt - y_pr, axis=-1)
    return (dist < threshold).astype(jnp.float32)


if __name__ == "__main__":
    key = jax.random.PRNGKey(0)
    k1, k2, k3 = jax.random.split(key, 3)

    # Small shape consistent with the module (batch x n_joints x 3).
    B, N = 2, 8
    y_pr = jax.random.normal(k1, (B, N, 3), dtype=jnp.float32) * 0.1
    points_gt = y_pr + jax.random.normal(k2, (B, N, 3), dtype=jnp.float32) * 0.1
    gt_mask = jax.random.bernoulli(k3, 0.75, (B, N))

    # Force the Pallas path (the default small-size fallback would use pure XLA here).
    out = pck_pallas(y_pr, points_gt, gt_mask, threshold=0.15, min_points_for_pallas=0)
    out = jax.block_until_ready(out)
    ref = _pck_reference(y_pr, points_gt, gt_mask, threshold=0.15)
    assert out.shape == (B, N)
    assert jnp.allclose(out, ref), (out, ref)

    # No-mask path through the default small-size XLA fallback.
    out2 = jax.block_until_ready(pck_pallas(y_pr, points_gt, None, threshold=0.15))
    ref2 = _pck_reference(y_pr, points_gt, None, threshold=0.15)
    assert jnp.allclose(out2, ref2), (out2, ref2)

    # Moderate shape: exercises a multi-step parallel grid and the ragged last block.
    kb1, kb2, kb3 = jax.random.split(jax.random.PRNGKey(1), 3)
    B2, N2 = 16, 133
    y2 = jax.random.normal(kb1, (B2, N2, 3), dtype=jnp.float32) * 0.1
    g2 = y2 + jax.random.normal(kb2, (B2, N2, 3), dtype=jnp.float32) * 0.1
    m2 = jax.random.bernoulli(kb3, 0.8, (B2, N2))
    out3 = jax.block_until_ready(
        pck_pallas(y2, g2, m2, threshold=0.15, min_points_for_pallas=0))
    ref3 = _pck_reference(y2, g2, m2, threshold=0.15)
    assert out3.shape == (B2, N2)
    assert jnp.allclose(out3, ref3), (out3, ref3)

    print("KERNEL_OK")
</pallas_src>

<mosaic_0001>
module attributes {stable_mosaic.version = 11 : i64} {
  func.func @_pck_kernel(%arg0: i32, %arg1: memref<3x8x128xf32, #tpu.memory_space<vmem>>, %arg2: memref<8x128xf32, #tpu.memory_space<vmem>>) attributes {dimension_semantics = [#tpu.dimension_semantics<parallel>], iteration_bounds = array<i64: 1>, scalar_prefetch = 0 : i64, scratch_operands = 0 : i64, tpu.core_type = #tpu.core_type<tc>, window_params = [{transform_indices = @transform_0, window_bounds = array<i64: 3, 8, 128>}, {transform_indices = @transform_1, window_bounds = array<i64: 8, 128>}]} {
    %c0 = arith.constant 0 : index
    %c0_0 = arith.constant 0 : index
    %c0_1 = arith.constant 0 : index
    %0 = vector.load %arg1[%c0, %c0_0, %c0_1] : memref<3x8x128xf32, #tpu.memory_space<vmem>>, vector<1x8x128xf32>
    %1 = vector.shape_cast %0 : vector<1x8x128xf32> to vector<8x128xf32>
    %c1 = arith.constant 1 : index
    %c0_2 = arith.constant 0 : index
    %c0_3 = arith.constant 0 : index
    %2 = vector.load %arg1[%c1, %c0_2, %c0_3] : memref<3x8x128xf32, #tpu.memory_space<vmem>>, vector<1x8x128xf32>
    %3 = vector.shape_cast %2 : vector<1x8x128xf32> to vector<8x128xf32>
    %c2 = arith.constant 2 : index
    %c0_4 = arith.constant 0 : index
    %c0_5 = arith.constant 0 : index
    %4 = vector.load %arg1[%c2, %c0_4, %c0_5] : memref<3x8x128xf32, #tpu.memory_space<vmem>>, vector<1x8x128xf32>
    %5 = vector.shape_cast %4 : vector<1x8x128xf32> to vector<8x128xf32>
    %6 = arith.mulf %1, %1 : vector<8x128xf32>
    %7 = arith.mulf %3, %3 : vector<8x128xf32>
    %8 = arith.addf %6, %7 : vector<8x128xf32>
    %9 = arith.mulf %5, %5 : vector<8x128xf32>
    %10 = arith.addf %8, %9 : vector<8x128xf32>
    %cst = arith.constant 2.250000e-02 : f32
    %11 = vector.broadcast %cst : f32 to vector<8x128xf32>
    %12 = arith.cmpf olt, %10, %11 : vector<8x128xf32>
    %13 = arith.extui %12 : vector<8x128xi1> to vector<8x128xi32>
    %14 = arith.sitofp %13 : vector<8x128xi32> to vector<8x128xf32>
    %c0_6 = arith.constant 0 : index
    %c0_7 = arith.constant 0 : index
    %15 = vector.load %arg2[%c0_6, %c0_7] : memref<8x128xf32, #tpu.memory_space<vmem>>, vector<8x128xf32>
    tpu.vector_store %arg2[%c0_6, %c0_7], %14 {strides = array<i32>} : memref<8x128xf32, #tpu.memory_space<vmem>>, vector<8x128xf32>,
    return
  }
  func.func @transform_0(%arg0: i32) -> (i32, i32, i32) {
    %c0_i32 = arith.constant 0 : i32
    %c0_i32_0 = arith.constant 0 : i32
    %c0_i32_1 = arith.constant 0 : i32
    return %c0_i32, %arg0, %c0_i32_0 : i32, i32, i32
  }
  func.func @transform_1(%arg0: i32) -> (i32, i32) {
    %c0_i32 = arith.constant 0 : i32
    %c0_i32_0 = arith.constant 0 : i32
    return %arg0, %c0_i32 : i32, i32
  }
}

</mosaic_0001>

<llo_original>
// kernel: tpu_custom_call.1
$region0: #{tpu_custom_call.1}
  #allocation0 [shape = 'u32[]', space=smem, size = 0x4, offset = 0x4, fixed_abs, tag = 'smem constant byte address 0x4 - core index']
  #allocation1 [shape = 'u32[72,128]{1,0:T(1,128)}', space=vmem, size = 0x9000, scoped, tag = 'internal scratch']
  %s0 = inlined_call_operand.hbm [shape: f32[3,8,128], index: 0, kind: input, shape index: {}]
  %s1 = inlined_call_operand.hbm [shape: f32[8,128], index: 1, kind: output, shape index: {}]
  %s2 = sld [smem:[#allocation0]]
  $region18: #{tpu_custom_call.1} parent=0
    _
  %s4 = ssub.s32 1, %s2
  %s5 = scalar_select 0, %s4, %s2
  $region1: #{tpu_custom_call.1} parent=0
    #allocation2 [shape = 'u8[12288]{0}', space=vmem, size = 0x3000, scoped, tag = 'input window, operand 0, single buffered']
    #allocation3 [shape = 's32[1]{0}', space=sflag, size = 0x4, scoped, tag = 'scoped memory for tpu_custom_call.1']
    #allocation4 [shape = 's32[1]{0}', space=sflag, size = 0x4, scoped, tag = 'scoped memory for tpu_custom_call.1']
    #allocation5 [shape = 'u8[4096]{0}', space=vmem, size = 0x1000, scoped, tag = 'output window, operand 0, single buffered']
    %6 = vsyncpa [#allocation3], 0
    %7 = vsyncpa [#allocation4], 0
    // Predicated region
    $region2: #{tpu_custom_call.1} parent=1 // pred_check
      _
    $region3: #{tpu_custom_call.1} parent=1 // pred_check_branch
      %9 = sbr.rel (0) target = $region5
    $region4: #{tpu_custom_call.1} parent=1 // pred_region
      %11 = vsyncadd [#allocation3], 0
      %s12 = sshll.u32 %s0, 4
      %s13 = int_to_ptr.hbm [resolvable:$true] %s12
      %s14 = sshll.u32 [#allocation2], 4
      %s15 = int_to_ptr.vmem [resolvable:$true] %s14
      %20 = dma.hbm_to_vmem [thread:$0]  %s13, 384, %s15, [#allocation3], 128, 128, 8
    $region5: #{tpu_custom_call.1} parent=1 // pred_fallthru
      _
    // Predicated region
    $region6: #{tpu_custom_call.1} parent=1 // pred_check
      _
    $region7: #{tpu_custom_call.1} parent=1 // pred_check_branch
      %22 = sbr.rel (0) target = $region9
    $region8: #{tpu_custom_call.1} parent=1 // pred_region
      %24 = dma.done [#allocation3], 384
    $region9: #{tpu_custom_call.1} parent=1 // pred_fallthru
      _
    %v25 = vld [vmem:[#allocation2] sm:$0xff]
    %s26 = scalar_lea.vmem [#allocation2], 8
    %v27 = vld [vmem:[%s26] sm:$0xff]
    %s28 = scalar_lea.vmem [#allocation2], 16
    %v29 = vld [vmem:[%s28] sm:$0xff]
    %v30 = vmul.f32 %v25, %v25
    %v31 = vmul.f32 %v27, %v27
    %v32 = vadd.f32 %v30, %v31
    %v33 = vmul.f32 %v29, %v29
    %v34 = vadd.f32 %v32, %v33
    %vm35 = vcmp.lt.f32.partialorder %v34, 0.0225
    %v36 = vsel %vm35, 1, 0
    %v37 = vcvt.s32.f32 %v36
    %38 = vst [vmem:[#allocation5] sm:$0xff] %v37
    // Predicated region
    $region10: #{tpu_custom_call.1} parent=1 // pred_check
      _
    $region11: #{tpu_custom_call.1} parent=1 // pred_check_branch
      %40 = sbr.rel (0) target = $region13
    $region12: #{tpu_custom_call.1} parent=1 // pred_region
      %42 = vsyncadd [#allocation4], 0
      %s44 = sshll.u32 [#allocation5], 4
      %s45 = int_to_ptr.vmem [resolvable:$true] %s44
      %s46 = sshll.u32 %s1, 4
      %s47 = int_to_ptr.hbm [resolvable:$true] %s46
      %49 = dma.vmem_to_hbm [thread:$0]  %s45, 128, %s47, [#allocation4]
    $region13: #{tpu_custom_call.1} parent=1 // pred_fallthru
      _
    // Predicated region
    $region14: #{tpu_custom_call.1} parent=1 // pred_check
      _
    $region15: #{tpu_custom_call.1} parent=1 // pred_check_branch
      %51 = sbr.rel (0) target = $region17
    $region16: #{tpu_custom_call.1} parent=1 // pred_region
      %53 = dma.done [#allocation4], 128
    $region17: #{tpu_custom_call.1} parent=1 // pred_fallthru
      _
    %54 = vsyncpa [#allocation3], 1
    %55 = vsyncpa [#allocation4], 1

</llo_original>
